<compile_context>
chip_gen: v6e
topology: v6e:2x2x1
jax: 0.10.0
libtpu: 0.0.40
codegen_flags: <defaults>
</compile_context>

<pallas_src>
import jax
import jax.numpy as jnp
from jax.experimental import pallas as pl
from jax.experimental.pallas import tpu as pltpu


def _lyapunov_kernel(xt_ref, w1t_ref, b1_ref, w2t_ref, b2_ref, w3t_ref, o_ref):
    # Transposed ("batch-on-lane") layout: columns are batch elements.
    xt = xt_ref[...]                                                     # (n_in, tm)
    h1 = jnp.dot(w1t_ref[...], xt, preferred_element_type=jnp.float32)   # (n_hid, tm)
    h1 = jnp.maximum(h1 + b1_ref[...], 0.0)                              # +bias, ReLU
    h2 = jnp.dot(w2t_ref[...], h1, preferred_element_type=jnp.float32)   # (n_hid, tm)
    h2 = jnp.maximum(h2 + b2_ref[...], 0.0)                              # +bias, ReLU
    y = jnp.dot(w3t_ref[...], h2, preferred_element_type=jnp.float32)    # (1, tm)
    o_ref[...] = jnp.tanh(y).astype(o_ref.dtype)                         # Tanh (EUP)


def lyapunov_known_forward(x, w1, b1, w2, b2, w3, *, tm=256):
    """x: (B, N_INPUT). w1: (N_INPUT, N_HIDDEN) block-diag. w2: (N_HIDDEN, N_HIDDEN)
    block-diag. b1, b2: (1, N_HIDDEN). w3: (N_HIDDEN, 1). Returns (B, 1)."""
    B, n_in = x.shape
    n_hidden = w1.shape[1]

    # Adaptive batch tile: lane-aligned (multiple of 128), no larger than needed,
    # no divisibility requirement on B (we pad).
    tm = max(128, min(tm, pl.cdiv(B, 128) * 128))
    b_pad = pl.cdiv(B, tm) * tm
    xt = jnp.pad(x.T, ((0, 0), (0, b_pad - B)))            # (n_in, b_pad)

    # Transposed weights / column biases for the batch-on-lane layout.
    w1t = w1.T                                             # (n_hidden, n_in)
    w2t = w2.T                                             # (n_hidden, n_hidden)
    w3t = w3.T                                             # (1, n_hidden)
    b1c = b1.reshape(n_hidden, 1)
    b2c = b2.reshape(n_hidden, 1)

    grid = (b_pad // tm,)
    out = pl.pallas_call(
        _lyapunov_kernel,
        out_shape=jax.ShapeDtypeStruct((1, b_pad), x.dtype),
        grid_spec=pltpu.PrefetchScalarGridSpec(
            num_scalar_prefetch=0,
            grid=grid,
            in_specs=[
                pl.BlockSpec((n_in, tm), lambda i: (0, i)),            # x^T tile (streams)
                pl.BlockSpec((n_hidden, n_in), lambda i: (0, 0)),      # W1^T (resident)
                pl.BlockSpec((n_hidden, 1), lambda i: (0, 0)),         # b1 (column)
                pl.BlockSpec((n_hidden, n_hidden), lambda i: (0, 0)),  # W2^T (resident)
                pl.BlockSpec((n_hidden, 1), lambda i: (0, 0)),         # b2 (column)
                pl.BlockSpec((1, n_hidden), lambda i: (0, 0)),         # w3^T (resident)
            ],
            out_specs=pl.BlockSpec((1, tm), lambda i: (0, i)),         # lane-dense out
        ),
        compiler_params=pltpu.CompilerParams(
            dimension_semantics=("parallel",)),
    )(xt, w1t, b1c, w2t, b2c, w3t)

    return out[:, :B].T                                    # back to (B, 1)


def make_params(key, n_input, n_hidden, decomposition):
    """Deterministically build per-subnetwork Linear params and pack them into
    block-diagonal matrices equivalent to the ModuleList of nn.Sequential's."""
    n_sub = len(decomposition)
    assert sum(decomposition) == n_input
    sub_hidden = n_hidden // n_sub

    w1 = jnp.zeros((n_input, n_hidden), jnp.float32)
    b1 = jnp.zeros((1, n_hidden), jnp.float32)
    w2 = jnp.zeros((n_hidden, n_hidden), jnp.float32)
    b2 = jnp.zeros((1, n_hidden), jnp.float32)

    row = 0
    keys = jax.random.split(key, 4 * n_sub + 1)
    for i, d in enumerate(decomposition):
        k1, k2, k3, k4 = keys[4 * i:4 * i + 4]
        # nn.Linear-style uniform init bounds (deterministic, synthetic weights)
        lim1 = 1.0 / jnp.sqrt(d)
        lim2 = 1.0 / jnp.sqrt(sub_hidden)
        w1_i = jax.random.uniform(k1, (d, sub_hidden), jnp.float32, -lim1, lim1)
        b1_i = jax.random.uniform(k2, (sub_hidden,), jnp.float32, -lim1, lim1)
        w2_i = jax.random.uniform(k3, (sub_hidden, sub_hidden), jnp.float32, -lim2, lim2)
        b2_i = jax.random.uniform(k4, (sub_hidden,), jnp.float32, -lim2, lim2)

        col = i * sub_hidden
        w1 = w1.at[row:row + d, col:col + sub_hidden].set(w1_i)
        b1 = b1.at[0, col:col + sub_hidden].set(b1_i)
        w2 = w2.at[col:col + sub_hidden, col:col + sub_hidden].set(w2_i)
        b2 = b2.at[0, col:col + sub_hidden].set(b2_i)
        row += d

    lim3 = 1.0 / jnp.sqrt(n_hidden)
    w3 = jax.random.uniform(keys[-1], (n_hidden, 1), jnp.float32, -lim3, lim3)
    return w1, b1, w2, b2, w3


def reference_forward(x, w1, b1, w2, b2, w3):
    h1 = jnp.maximum(x @ w1 + b1, 0.0)
    h2 = jnp.maximum(h1 @ w2 + b2, 0.0)
    return jnp.tanh(h2 @ w3)


if __name__ == "__main__":
    # Shapes consistent with the module: N_INPUT=8 split as [4,4], N_HIDDEN=32.
    # Batch chosen so the grid has 2 "parallel" steps (tm=256) -> both v7x TCs used.
    N_INPUT = 8
    N_HIDDEN = 32
    DECOMPOSITION = [4, 4]
    BATCH = 512

    key = jax.random.PRNGKey(0)
    kx, kp = jax.random.split(key)
    x = jax.random.normal(kx, (BATCH, N_INPUT), jnp.float32)
    w1, b1, w2, b2, w3 = make_params(kp, N_INPUT, N_HIDDEN, DECOMPOSITION)

    out = lyapunov_known_forward(x, w1, b1, w2, b2, w3, tm=256)
    out = jax.block_until_ready(out)

    ref = reference_forward(x, w1, b1, w2, b2, w3)
    assert out.shape == (BATCH, 1)
    assert jnp.allclose(out, ref, atol=2e-5, rtol=2e-5)
    print("KERNEL_OK")
</pallas_src>

<mosaic_0001>
module attributes {stable_mosaic.version = 11 : i64} {
  func.func @_lyapunov_kernel(%arg0: i32, %arg1: memref<8x256xf32, #tpu.memory_space<vmem>>, %arg2: memref<32x8xf32, #tpu.memory_space<vmem>>, %arg3: memref<32x1xf32, #tpu.memory_space<vmem>>, %arg4: memref<32x32xf32, #tpu.memory_space<vmem>>, %arg5: memref<32x1xf32, #tpu.memory_space<vmem>>, %arg6: memref<1x32xf32, #tpu.memory_space<vmem>>, %arg7: memref<1x256xf32, #tpu.memory_space<vmem>>) attributes {dimension_semantics = [#tpu.dimension_semantics<parallel>], iteration_bounds = array<i64: 2>, scalar_prefetch = 0 : i64, scratch_operands = 0 : i64, tpu.core_type = #tpu.core_type<tc>, window_params = [{transform_indices = @transform_0, window_bounds = array<i64: 8, 256>}, {pipeline_mode = #tpu.pipeline_mode<synchronous>, transform_indices = @transform_1, window_bounds = array<i64: 32, 8>}, {pipeline_mode = #tpu.pipeline_mode<synchronous>, transform_indices = @transform_2, window_bounds = array<i64: 32, 1>}, {pipeline_mode = #tpu.pipeline_mode<synchronous>, transform_indices = @transform_3, window_bounds = array<i64: 32, 32>}, {pipeline_mode = #tpu.pipeline_mode<synchronous>, transform_indices = @transform_4, window_bounds = array<i64: 32, 1>}, {pipeline_mode = #tpu.pipeline_mode<synchronous>, transform_indices = @transform_5, window_bounds = array<i64: 1, 32>}, {transform_indices = @transform_6, window_bounds = array<i64: 1, 256>}]} {
    %c0 = arith.constant 0 : index
    %c0_0 = arith.constant 0 : index
    %0 = vector.load %arg1[%c0, %c0_0] : memref<8x256xf32, #tpu.memory_space<vmem>>, vector<8x256xf32>
    %c0_1 = arith.constant 0 : index
    %c0_2 = arith.constant 0 : index
    %1 = vector.load %arg2[%c0_1, %c0_2] : memref<32x8xf32, #tpu.memory_space<vmem>>, vector<32x8xf32>
    %cst = arith.constant dense<0.000000e+00> : vector<32x256xf32>
    %2 = tpu.matmul %1, %0, %cst {dimension_numbers = #tpu.dot_dimension_numbers<[1], [0], [0], [1], [0, 0, 1, 1], [], []>} : vector<32x8xf32>, vector<8x256xf32>, vector<32x256xf32> -> vector<32x256xf32>
    %c0_3 = arith.constant 0 : index
    %c0_4 = arith.constant 0 : index
    %3 = vector.load %arg3[%c0_3, %c0_4] : memref<32x1xf32, #tpu.memory_space<vmem>>, vector<32x1xf32>
    %4 = vector.broadcast %3 : vector<32x1xf32> to vector<32x256xf32>
    %5 = arith.addf %2, %4 : vector<32x256xf32>
    %cst_5 = arith.constant 0.000000e+00 : f32
    %6 = vector.broadcast %cst_5 : f32 to vector<32x256xf32>
    %7 = arith.maximumf %5, %6 : vector<32x256xf32>
    %c0_6 = arith.constant 0 : index
    %c0_7 = arith.constant 0 : index
    %8 = vector.load %arg4[%c0_6, %c0_7] : memref<32x32xf32, #tpu.memory_space<vmem>>, vector<32x32xf32>
    %cst_8 = arith.constant dense<0.000000e+00> : vector<32x256xf32>
    %9 = tpu.matmul %8, %7, %cst_8 {dimension_numbers = #tpu.dot_dimension_numbers<[1], [0], [0], [1], [0, 0, 1, 1], [], []>} : vector<32x32xf32>, vector<32x256xf32>, vector<32x256xf32> -> vector<32x256xf32>
    %c0_9 = arith.constant 0 : index
    %c0_10 = arith.constant 0 : index
    %10 = vector.load %arg5[%c0_9, %c0_10] : memref<32x1xf32, #tpu.memory_space<vmem>>, vector<32x1xf32>
    %11 = vector.broadcast %10 : vector<32x1xf32> to vector<32x256xf32>
    %12 = arith.addf %9, %11 : vector<32x256xf32>
    %cst_11 = arith.constant 0.000000e+00 : f32
    %13 = vector.broadcast %cst_11 : f32 to vector<32x256xf32>
    %14 = arith.maximumf %12, %13 : vector<32x256xf32>
    %c0_12 = arith.constant 0 : index
    %c0_13 = arith.constant 0 : index
    %15 = vector.load %arg6[%c0_12, %c0_13] : memref<1x32xf32, #tpu.memory_space<vmem>>, vector<1x32xf32>
    %cst_14 = arith.constant dense<0.000000e+00> : vector<1x256xf32>
    %16 = tpu.matmul %15, %14, %cst_14 {dimension_numbers = #tpu.dot_dimension_numbers<[1], [0], [0], [1], [0, 0, 1, 1], [], []>} : vector<1x32xf32>, vector<32x256xf32>, vector<1x256xf32> -> vector<1x256xf32>
    %17 = math.tanh %16 : vector<1x256xf32>
    %c0_15 = arith.constant 0 : index
    %c0_16 = arith.constant 0 : index
    %18 = vector.load %arg7[%c0_15, %c0_16] : memref<1x256xf32, #tpu.memory_space<vmem>>, vector<1x256xf32>
    tpu.vector_store %arg7[%c0_15, %c0_16], %17 {strides = array<i32>} : memref<1x256xf32, #tpu.memory_space<vmem>>, vector<1x256xf32>,
    return
  }
  func.func @transform_0(%arg0: i32) -> (i32, i32) {
    %c0_i32 = arith.constant 0 : i32
    %c0_i32_0 = arith.constant 0 : i32
    return %c0_i32, %arg0 : i32, i32
  }
  func.func @transform_1(%arg0: i32) -> (i32, i32) {
    %c0_i32 = arith.constant 0 : i32
    %c0_i32_0 = arith.constant 0 : i32
    %c0_i32_1 = arith.constant 0 : i32
    return %c0_i32, %c0_i32_0 : i32, i32
  }
  func.func @transform_2(%arg0: i32) -> (i32, i32) {
    %c0_i32 = arith.constant 0 : i32
    %c0_i32_0 = arith.constant 0 : i32
    %c0_i32_1 = arith.constant 0 : i32
    return %c0_i32, %c0_i32_0 : i32, i32
  }
  func.func @transform_3(%arg0: i32) -> (i32, i32) {
    %c0_i32 = arith.constant 0 : i32
    %c0_i32_0 = arith.constant 0 : i32
    %c0_i32_1 = arith.constant 0 : i32
    return %c0_i32, %c0_i32_0 : i32, i32
  }
  func.func @transform_4(%arg0: i32) -> (i32, i32) {
    %c0_i32 = arith.constant 0 : i32
    %c0_i32_0 = arith.constant 0 : i32
    %c0_i32_1 = arith.constant 0 : i32
    return %c0_i32, %c0_i32_0 : i32, i32
  }
  func.func @transform_5(%arg0: i32) -> (i32, i32) {
    %c0_i32 = arith.constant 0 : i32
    %c0_i32_0 = arith.constant 0 : i32
    %c0_i32_1 = arith.constant 0 : i32
    return %c0_i32, %c0_i32_0 : i32, i32
  }
  func.func @transform_6(%arg0: i32) -> (i32, i32) {
    %c0_i32 = arith.constant 0 : i32
    %c0_i32_0 = arith.constant 0 : i32
    return %c0_i32, %arg0 : i32, i32
  }
}

</mosaic_0001>

<llo_original>
// kernel: tpu_custom_call.1
$region0: #{tpu_custom_call.1}
  #allocation0 [shape = 'u32[]', space=smem, size = 0x4, offset = 0x4, fixed_abs, tag = 'smem constant byte address 0x4 - core index']
  #allocation1 [shape = 'u32[144,128]{1,0:T(1,128)}', space=vmem, size = 0x12000, scoped, tag = 'internal scratch']
  %s0 = inlined_call_operand.vmem [shape: f32[8,512], index: 0, kind: input, shape index: {}]
  %s1 = inlined_call_operand.vmem [shape: f32[32,8], index: 1, kind: input, shape index: {}]
  %s2 = inlined_call_operand.vmem [shape: f32[32,1], index: 2, kind: input, shape index: {}]
  %s3 = inlined_call_operand.vmem [shape: f32[32,32], index: 3, kind: input, shape index: {}]
  %s4 = inlined_call_operand.vmem [shape: f32[32,1], index: 4, kind: input, shape index: {}]
  %s5 = inlined_call_operand.vmem [shape: f32[1,32], index: 5, kind: input, shape index: {}]
  %s6 = inlined_call_operand.hbm [shape: f32[1,512], index: 6, kind: output, shape index: {}]
  %s7 = sld [smem:[#allocation0]]
  $region57: #{tpu_custom_call.1} parent=0
    _
  %s9 = ssub.s32 1, %s7
  %s10 = scalar_select 0, %s9, %s7
  $region1: #{tpu_custom_call.1} parent=0
    #allocation2 [shape = 'u8[2048]{0}', space=vmem, size = 0x800, scoped, tag = 'output window, operand 0']
    #allocation3 [shape = 's32[2]{0}', space=sflag, size = 0x8, scoped, tag = 'scoped memory for tpu_custom_call.1']
    %11 = vsyncpa [#allocation3], 0
    %s12 = scalar_lea.sflag [#allocation3], 1
    %13 = vsyncpa %s12, 0
    loop: start=0, step=1, limit=4
    $region2: #{tpu_custom_call.1} parent=1 // loop_pre_header
      _
    $region3: #{tpu_custom_call.1} parent=1 // loop_header
      %s15 = sphi 0, %s19
      %p16 = scmp.ge.s32.totalorder %s15, 4
      %s25 = sphi 0, %s27
      %s28 = sphi 0, %s25
      %s29 = sphi 0, %s28
      %s45 = sphi 0, %s29
      %s49 = sphi 0, %s49
      %s51 = sphi 0, %s49
      %s52 = sphi 0, %s51
      %s66 = sphi 0, %s52
      %s70 = sphi 0, %s70
      %s72 = sphi 0, %s70
      %s73 = sphi 0, %s72
      %s87 = sphi 0, %s73
      %s91 = sphi 0, %s91
      %s93 = sphi 0, %s91
      %s94 = sphi 0, %s93
      %s108 = sphi 0, %s94
      %s112 = sphi 0, %s112
      %s114 = sphi 0, %s112
      %s115 = sphi 0, %s114
      %s129 = sphi 0, %s115
      %s133 = sphi 0, %s133
      %s135 = sphi 0, %s133
      %s136 = sphi 0, %s135
      %s150 = sphi 0, %s136
      %s156 = sphi 0, %s158
      %s159 = sphi 0, %s156
      %s160 = sphi 0, %s159
      %s176 = sphi 0, %s160
    $region4: #{tpu_custom_call.1} parent=1 // loop_header_branch
      %18 = sbr.rel (%p16) target = $region8
    $region5: #{tpu_custom_call.1} parent=1 // loop_body
      %s20 = ssub.s32 %s15, 1
      %s21 = ssub.s32 %s15, 2
      %s22 = sadd.s32 %s15, 1
      %s23 = ssub.s32 %s15, %s22
      %p24 = scmp.eq.s32.totalorder %s23, 0
      %s26 = sadd.s32 %s25, 1
      %s27 = scalar_select %p24, %s25, %s26
      %p30 = pneg %p24
      %p31 = scmp.eq.s32.totalorder %s15, 1
      %p32 = por %p30, %p31
      %p33 = scmp.ne.s32.totalorder %s25, %s28
      %p34 = scmp.eq.s32.totalorder %s15, 0
      %p35 = por %p33, %p34
      %p36 = scmp.ne.s32.totalorder %s25, %s28
      %p37 = scmp.eq.s32.totalorder %s20, 1
      %p38 = por %p36, %p37
      %p39 = scmp.ne.s32.totalorder %s28, %s29
      %p40 = scmp.eq.s32.totalorder %s20, 0
      %p41 = por %p39, %p40
      %p42 = scmp.ne.s32.totalorder %s28, %s29
      %p43 = scmp.eq.s32.totalorder %s21, 1
      %p44 = por %p42, %p43
      %p46 = scmp.ne.s32.totalorder %s29, %s45
      %p47 = scmp.eq.s32.totalorder %s21, 0
      %p48 = por %p46, %p47
      %s50 = sadd.s32 %s49, 1
      %p53 = scmp.eq.s32.totalorder %s15, 1
      %p54 = scmp.ne.s32.totalorder %s49, %s51
      %p55 = scmp.eq.s32.totalorder %s15, 0
      %p56 = por %p54, %p55
      %p57 = scmp.ne.s32.totalorder %s49, %s51
      %p58 = scmp.eq.s32.totalorder %s20, 1
      %p59 = por %p57, %p58
      %p60 = scmp.ne.s32.totalorder %s51, %s52
      %p61 = scmp.eq.s32.totalorder %s20, 0
      %p62 = por %p60, %p61
      %p63 = scmp.ne.s32.totalorder %s51, %s52
      %p64 = scmp.eq.s32.totalorder %s21, 1
      %p65 = por %p63, %p64
      %p67 = scmp.ne.s32.totalorder %s52, %s66
      %p68 = scmp.eq.s32.totalorder %s21, 0
      %p69 = por %p67, %p68
      %s71 = sadd.s32 %s70, 1
      %p74 = scmp.eq.s32.totalorder %s15, 1
      %p75 = scmp.ne.s32.totalorder %s70, %s72
      %p76 = scmp.eq.s32.totalorder %s15, 0
      %p77 = por %p75, %p76
      %p78 = scmp.ne.s32.totalorder %s70, %s72
      %p79 = scmp.eq.s32.totalorder %s20, 1
      %p80 = por %p78, %p79
      %p81 = scmp.ne.s32.totalorder %s72, %s73
      %p82 = scmp.eq.s32.totalorder %s20, 0
      %p83 = por %p81, %p82
      %p84 = scmp.ne.s32.totalorder %s72, %s73
      %p85 = scmp.eq.s32.totalorder %s21, 1
      %p86 = por %p84, %p85
      %p88 = scmp.ne.s32.totalorder %s73, %s87
      %p89 = scmp.eq.s32.totalorder %s21, 0
      %p90 = por %p88, %p89
      %s92 = sadd.s32 %s91, 1
      %p95 = scmp.eq.s32.totalorder %s15, 1
      %p96 = scmp.ne.s32.totalorder %s91, %s93
      %p97 = scmp.eq.s32.totalorder %s15, 0
      %p98 = por %p96, %p97
      %p99 = scmp.ne.s32.totalorder %s91, %s93
      %p100 = scmp.eq.s32.totalorder %s20, 1
      %p101 = por %p99, %p100
      %p102 = scmp.ne.s32.totalorder %s93, %s94
      %p103 = scmp.eq.s32.totalorder %s20, 0
      %p104 = por %p102, %p103
      %p105 = scmp.ne.s32.totalorder %s93, %s94
      %p106 = scmp.eq.s32.totalorder %s21, 1
      %p107 = por %p105, %p106
      %p109 = scmp.ne.s32.totalorder %s94, %s108
      %p110 = scmp.eq.s32.totalorder %s21, 0
      %p111 = por %p109, %p110
      %s113 = sadd.s32 %s112, 1
      %p116 = scmp.eq.s32.totalorder %s15, 1
      %p117 = scmp.ne.s32.totalorder %s112, %s114
      %p118 = scmp.eq.s32.totalorder %s15, 0
      %p119 = por %p117, %p118
      %p120 = scmp.ne.s32.totalorder %s112, %s114
      %p121 = scmp.eq.s32.totalorder %s20, 1
      %p122 = por %p120, %p121
      %p123 = scmp.ne.s32.totalorder %s114, %s115
      %p124 = scmp.eq.s32.totalorder %s20, 0
      %p125 = por %p123, %p124
      %p126 = scmp.ne.s32.totalorder %s114, %s115
      %p127 = scmp.eq.s32.totalorder %s21, 1
      %p128 = por %p126, %p127
      %p130 = scmp.ne.s32.totalorder %s115, %s129
      %p131 = scmp.eq.s32.totalorder %s21, 0
      %p132 = por %p130, %p131
      %s134 = sadd.s32 %s133, 1
      %p137 = scmp.eq.s32.totalorder %s15, 1
      %p138 = scmp.ne.s32.totalorder %s133, %s135
      %p139 = scmp.eq.s32.totalorder %s15, 0
      %p140 = por %p138, %p139
      %p141 = scmp.ne.s32.totalorder %s133, %s135
      %p142 = scmp.eq.s32.totalorder %s20, 1
      %p143 = por %p141, %p142
      %p144 = scmp.ne.s32.totalorder %s135, %s136
      %p145 = scmp.eq.s32.totalorder %s20, 0
      %p146 = por %p144, %p145
      %p147 = scmp.ne.s32.totalorder %s135, %s136
      %p148 = scmp.eq.s32.totalorder %s21, 1
      %p149 = por %p147, %p148
      %p151 = scmp.ne.s32.totalorder %s136, %s150
      %p152 = scmp.eq.s32.totalorder %s21, 0
      %p153 = por %p151, %p152
      %s154 = ssub.s32 %s15, %s22
      %p155 = scmp.eq.s32.totalorder %s154, 0
      %s157 = sadd.s32 %s156, 1
      %s158 = scalar_select %p155, %s156, %s157
      %p161 = pneg %p155
      %p162 = scmp.eq.s32.totalorder %s15, 1
      %p163 = por %p161, %p162
      %p164 = scmp.ne.s32.totalorder %s156, %s159
      %p165 = scmp.eq.s32.totalorder %s15, 0
      %p166 = por %p164, %p165
      %p167 = scmp.ne.s32.totalorder %s156, %s159
      %p168 = scmp.eq.s32.totalorder %s20, 1
      %p169 = por %p167, %p168
      %p170 = scmp.ne.s32.totalorder %s159, %s160
      %p171 = scmp.eq.s32.totalorder %s20, 0
      %p172 = por %p170, %p171
      %p173 = scmp.ne.s32.totalorder %s159, %s160
      %p174 = scmp.eq.s32.totalorder %s21, 1
      %p175 = por %p173, %p174
      %p177 = scmp.ne.s32.totalorder %s160, %s176
      %p178 = scmp.eq.s32.totalorder %s21, 0
      %p179 = por %p177, %p178
      %p180 = scmp.le.s32.totalorder 1, %s15
      %p181 = scmp.lt.s32.totalorder %s15, 3
      %p182 = pnand %p180, %p181
      %p183 = pneg %p182
      // Predicated region
      $region9: #{tpu_custom_call.1} parent=5 // pred_check
        _
      $region10: #{tpu_custom_call.1} parent=5 // pred_check_branch
        %185 = sbr.rel (%p182) target = $region12
      $region11: #{tpu_custom_call.1} parent=5 // pred_region
        %s186 = ssub.s32 %s15, 1
        // Predicated region
        $region13: #{tpu_custom_call.1} parent=11 // pred_check
          %p187 = pneg %p62
        $region14: #{tpu_custom_call.1} parent=11 // pred_check_branch
          %189 = sbr.rel (%p187) target = $region16
        $region15: #{tpu_custom_call.1} parent=11 // pred_region
          _
        $region16: #{tpu_custom_call.1} parent=11 // pred_fallthru
          _
        // Predicated region
        $region17: #{tpu_custom_call.1} parent=11 // pred_check
          %p190 = pneg %p83
        $region18: #{tpu_custom_call.1} parent=11 // pred_check_branch
          %192 = sbr.rel (%p190) target = $region20
        $region19: #{tpu_custom_call.1} parent=11 // pred_region
          _
        $region20: #{tpu_custom_call.1} parent=11 // pred_fallthru
          _
        // Predicated region
        $region21: #{tpu_custom_call.1} parent=11 // pred_check
          %p193 = pneg %p104
        $region22: #{tpu_custom_call.1} parent=11 // pred_check_branch
          %195 = sbr.rel (%p193) target = $region24
        $region23: #{tpu_custom_call.1} parent=11 // pred_region
          _
        $region24: #{tpu_custom_call.1} parent=11 // pred_fallthru
          _
        // Predicated region
        $region25: #{tpu_custom_call.1} parent=11 // pred_check
          %p196 = pneg %p125
        $region26: #{tpu_custom_call.1} parent=11 // pred_check_branch
          %198 = sbr.rel (%p196) target = $region28
        $region27: #{tpu_custom_call.1} parent=11 // pred_region
          _
        $region28: #{tpu_custom_call.1} parent=11 // pred_fallthru
          _
        // Predicated region
        $region29: #{tpu_custom_call.1} parent=11 // pred_check
          %p199 = pneg %p146
        $region30: #{tpu_custom_call.1} parent=11 // pred_check_branch
          %201 = sbr.rel (%p199) target = $region32
        $region31: #{tpu_custom_call.1} parent=11 // pred_region
          _
        $region32: #{tpu_custom_call.1} parent=11 // pred_fallthru
          _
      $region12: #{tpu_custom_call.1} parent=5 // pred_fallthru
        _
      %p202 = scmp.lt.s32.totalorder %s15, 2
      // Predicated region
      $region33: #{tpu_custom_call.1} parent=5 // pred_check
        %p203 = pneg %p202
      $region34: #{tpu_custom_call.1} parent=5 // pred_check_branch
        %205 = sbr.rel (%p203) target = $region36
      $region35: #{tpu_custom_call.1} parent=5 // pred_region
        // Predicated region
        $region37: #{tpu_custom_call.1} parent=35 // pred_check
          %p206 = pneg %p35
        $region38: #{tpu_custom_call.1} parent=35 // pred_check_branch
          %208 = sbr.rel (%p206) target = $region40
        $region39: #{tpu_custom_call.1} parent=35 // pred_region
          %s209 = smul.u32 2, %s15
          %p210 = scmp.lt.s32.totalorder %s209, 3
          %s211 = scalar_select %p210, %s209, 3
          %s212 = smul.addr %s211, 8
          %s213 = scalar_lea.vmem %s0, %s212
          %s214 = smul.u32 2, %s15
        $region40: #{tpu_custom_call.1} parent=35 // pred_fallthru
          _
      $region36: #{tpu_custom_call.1} parent=5 // pred_fallthru
        _
      %p215 = scmp.le.s32.totalorder 1, %s15
      %p216 = scmp.lt.s32.totalorder %s15, 3
      %p217 = pnand %p215, %p216
      %p218 = pneg %p217
      // Predicated region
      $region41: #{tpu_custom_call.1} parent=5 // pred_check
        _
      $region42: #{tpu_custom_call.1} parent=5 // pred_check_branch
        %220 = sbr.rel (%p217) target = $region44
      $region43: #{tpu_custom_call.1} parent=5 // pred_region
        %s221 = ssub.s32 %s15, 1
        %s222 = smul.u32 2, %s20
        %p223 = scmp.lt.s32.totalorder %s222, 3
        %s224 = scalar_select %p223, %s222, 3
        %s225 = smul.addr %s224, 8
        %s226 = scalar_lea.vmem %s0, %s225
        %p227 = pneg %p41
        %p228 = pneg %p38
        %p229 = pneg %p62
        %p230 = pneg %p59
        %p231 = pneg %p83
        %p232 = pneg %p80
        %p233 = pneg %p104
        %p234 = pneg %p101
        %p235 = pneg %p125
        %p236 = pneg %p122
        %p237 = pneg %p146
        %p238 = pneg %p143
        %p239 = pneg %p172
        %p240 = pneg %p169
        %s241 = sand.u32 %s159, 1
        %s242 = scalar_lea.sflag [#allocation3], %s241
        %s243 = sand.u32 %s159, 1
        %s244 = smul.addr %s243, 2
        %s245 = scalar_lea.vmem [#allocation2], %s244
        %s246 = smul.u32 2, %s20
        %p247 = scmp.lt.s32.totalorder %s246, 3
        %s248 = scalar_select %p247, %s246, 3
        %s249 = smul.addr %s248, 8
        %s250 = scalar_lea.vmem %s0, %s249
        %s251 = smul.u32 2, %s20
        %s252 = smul.u32 2, %s20
        %v253 = vld [vmem:[%s250] sm:$0xff]
        %v254 = vld [vmem:[%s250 + $0x8] sm:$0xff]
        %v255 = vld [vmem:[%s1] sm:$0xff]
        %v256 = vld [vmem:[%s1 + $0x8] sm:$0xff]
        %v257 = vld [vmem:[%s1 + $0x10] sm:$0xff]
        %v258 = vld [vmem:[%s1 + $0x18] sm:$0xff]
        %v259 = vld [vmem:[%s2] sm:$0xff]
        %v260 = vld [vmem:[%s2 + $0x8] sm:$0xff]
        %v261 = vld [vmem:[%s2 + $0x10] sm:$0xff]
        %v262 = vld [vmem:[%s2 + $0x18] sm:$0xff]
        %264 = vset.pattern.permute.xlu0 0
        %265 = vperm.xlu0 %264, %v259
        %v266 = vpop.permute.xlu0 %265
        %269 = vset.pattern.permute.xlu0 0
        %270 = vperm.xlu0 %269, %v260
        %v271 = vpop.permute.xlu0 %270
        %274 = vset.pattern.permute.xlu0 0
        %275 = vperm.xlu0 %274, %v261
        %v276 = vpop.permute.xlu0 %275
        %279 = vset.pattern.permute.xlu0 0
        %280 = vperm.xlu0 %279, %v262
        %v281 = vpop.permute.xlu0 %280
        %vm283 = vcmask 64512
        %v285 = vsel %vm283, %v255, 0
        %v288 = vsel %vm283, %v256, 0
        %v291 = vsel %vm283, %v257, 0
        %v294 = vsel %vm283, %v258, 0
        %296 = vmatprep.subr.mxu0 0.0
        %297 = vmatpush1.msra.mxu0 0.0
        %298 = vmatprep.subr.mxu0 0.0
        %299 = vmatpush1.msra.mxu0 0.0
        %300 = vmatprep.subr.mxu0 0.0
        %301 = vmatpush1.msra.mxu0 0.0
        %302 = vmatprep.subr.mxu0 0.0
        %303 = vmatpush1.msra.mxu0 0.0
        %304 = vmatprep.subr.mxu0 0.0
        %305 = vmatpush1.msra.mxu0 0.0
        %306 = vmatprep.subr.mxu0 0.0
        %307 = vmatpush1.msra.mxu0 0.0
        %308 = vmatprep.subr.mxu0 0.0
        %309 = vmatpush1.msra.mxu0 0.0
        %310 = vmatprep.subr.mxu0 0.0
        %311 = vmatpush1.msra.mxu0 0.0
        %312 = vmatprep.subr.mxu0 0.0
        %313 = vmatpush1.msra.mxu0 0.0
        %314 = vmatprep.subr.mxu0 0.0
        %315 = vmatpush1.msra.mxu0 0.0
        %316 = vmatprep.subr.mxu0 0.0
        %317 = vmatpush1.msra.mxu0 0.0
        %318 = vmatprep.subr.mxu0 0.0
        %319 = vmatpush1.msra.mxu0 0.0
        %320 = vmatprep.subr.mxu0 0.0
        %321 = vmatpush1.msra.mxu0 0.0
        %322 = vmatprep.subr.mxu0 0.0
        %323 = vmatpush1.msra.mxu0 0.0
        %324 = vmatprep.subr.mxu0 0.0
        %325 = vmatpush1.msra.mxu0 0.0
        %326 = vmatprep.subr.mxu0 %v254
        %327 = vmatpush1.msra.mxu0 %v253
        %328 = vmatprep.subr.mxu0 0.0
        %329 = vmatpush2.msra.mxu0 0.0
        %330 = vmatprep.subr.mxu0 0.0
        %331 = vmatpush2.msra.mxu0 0.0
        %332 = vmatprep.subr.mxu0 0.0
        %333 = vmatpush2.msra.mxu0 0.0
        %334 = vmatprep.subr.mxu0 0.0
        %335 = vmatpush2.msra.mxu0 0.0
        %336 = vmatprep.subr.mxu0 0.0
        %337 = vmatpush2.msra.mxu0 0.0
        %338 = vmatprep.subr.mxu0 0.0
        %339 = vmatpush2.msra.mxu0 0.0
        %340 = vmatprep.subr.mxu0 0.0
        %341 = vmatpush2.msra.mxu0 0.0
        %342 = vmatprep.subr.mxu0 0.0
        %343 = vmatpush2.msra.mxu0 0.0
        %344 = vmatprep.subr.mxu0 0.0
        %345 = vmatpush2.msra.mxu0 0.0
        %346 = vmatprep.subr.mxu0 0.0
        %347 = vmatpush2.msra.mxu0 0.0
        %348 = vmatprep.subr.mxu0 0.0
        %349 = vmatpush2.msra.mxu0 0.0
        %350 = vmatprep.subr.mxu0 0.0
        %351 = vmatpush2.msra.mxu0 0.0
        %352 = vmatprep.subr.mxu0 0.0
        %353 = vmatpush2.msra.mxu0 0.0
        %354 = vmatprep.subr.mxu0 0.0
        %355 = vmatpush2.msra.mxu0 0.0
        %356 = vmatprep.subr.mxu0 0.0
        %357 = vmatpush2.msra.mxu0 0.0
        %358 = vmatprep.subr.mxu0 0.0
        %359 = vmatpush2.msra.mxu0 0.0
        %360 = vmatprep.mubr.f32.mxu0 0.0
        %361 = vmatmul.mubr.f32.gmra.mxu0 %v285
        %v362 = vpop.f32.mrf.mxu0
        %v363 = vadd.f32 %v266, %v362
        %v364 = vpop.f32.mrf.mxu0
        %v365 = vadd.f32 %v266, %v364
        %366 = vmatprep.mubr.f32.mxu0 0.0
        %367 = vmatmul.mubr.f32.gmra.mxu0 %v288
        %v368 = vpop.f32.mrf.mxu0
        %v369 = vadd.f32 %v271, %v368
        %v370 = vpop.f32.mrf.mxu0
        %v371 = vadd.f32 %v271, %v370
        %372 = vmatprep.mubr.f32.mxu0 0.0
        %373 = vmatmul.mubr.f32.gmra.mxu0 %v291
        %v374 = vpop.f32.mrf.mxu0
        %v375 = vadd.f32 %v276, %v374
        %v376 = vpop.f32.mrf.mxu0
        %v377 = vadd.f32 %v276, %v376
        %378 = vmatprep.mubr.f32.mxu0 0.0
        %379 = vmatmul.mubr.f32.gmra.mxu0 %v294
        %v380 = vpop.f32.mrf.mxu0
        %v381 = vadd.f32 %v281, %v380
        %v382 = vpop.f32.mrf.mxu0
        %v383 = vadd.f32 %v281, %v382
        %384 = vdwg.mxu0
        %v385 = vmax.f32 %v363, 0.0
        %v386 = vmax.f32 %v365, 0.0
        %v387 = vmax.f32 %v369, 0.0
        %v388 = vmax.f32 %v371, 0.0
        %v389 = vmax.f32 %v375, 0.0
        %v390 = vmax.f32 %v377, 0.0
        %v391 = vmax.f32 %v381, 0.0
        %v392 = vmax.f32 %v383, 0.0
        %v393 = vld [vmem:[%s3] sm:$0xff]
        %v394 = vld [vmem:[%s3 + $0x8] sm:$0xff]
        %v395 = vld [vmem:[%s3 + $0x10] sm:$0xff]
        %v396 = vld [vmem:[%s3 + $0x18] sm:$0xff]
        %v397 = vld [vmem:[%s4] sm:$0xff]
        %v398 = vld [vmem:[%s4 + $0x8] sm:$0xff]
        %v399 = vld [vmem:[%s4 + $0x10] sm:$0xff]
        %v400 = vld [vmem:[%s4 + $0x18] sm:$0xff]
        %402 = vset.pattern.permute.xlu0 0
        %403 = vperm.xlu0 %402, %v397
        %v404 = vpop.permute.xlu0 %403
        %407 = vset.pattern.permute.xlu0 0
        %408 = vperm.xlu0 %407, %v398
        %v409 = vpop.permute.xlu0 %408
        %412 = vset.pattern.permute.xlu0 0
        %413 = vperm.xlu0 %412, %v399
        %v414 = vpop.permute.xlu0 %413
        %417 = vset.pattern.permute.xlu0 0
        %418 = vperm.xlu0 %417, %v400
        %v419 = vpop.permute.xlu0 %418
        %vm421 = vcmask 261120
        %v423 = vsel %vm421, %v393, 0
        %v426 = vsel %vm421, %v394, 0
        %v429 = vsel %vm421, %v395, 0
        %v432 = vsel %vm421, %v396, 0
        %434 = vmatprep.subr.mxu0 0.0
        %435 = vmatpush1.msra.mxu0 0.0
        %436 = vmatprep.subr.mxu0 0.0
        %437 = vmatpush1.msra.mxu0 0.0
        %438 = vmatprep.subr.mxu0 0.0
        %439 = vmatpush1.msra.mxu0 0.0
        %440 = vmatprep.subr.mxu0 0.0
        %441 = vmatpush1.msra.mxu0 0.0
        %442 = vmatprep.subr.mxu0 0.0
        %443 = vmatpush1.msra.mxu0 0.0
        %444 = vmatprep.subr.mxu0 0.0
        %445 = vmatpush1.msra.mxu0 0.0
        %446 = vmatprep.subr.mxu0 0.0
        %447 = vmatpush1.msra.mxu0 0.0
        %448 = vmatprep.subr.mxu0 0.0
        %449 = vmatpush1.msra.mxu0 0.0
        %450 = vmatprep.subr.mxu0 0.0
        %451 = vmatpush1.msra.mxu0 0.0
        %452 = vmatprep.subr.mxu0 0.0
        %453 = vmatpush1.msra.mxu0 0.0
        %454 = vmatprep.subr.mxu0 0.0
        %455 = vmatpush1.msra.mxu0 0.0
        %456 = vmatprep.subr.mxu0 0.0
        %457 = vmatpush1.msra.mxu0 0.0
        %458 = vmatprep.subr.mxu0 %v392
        %459 = vmatpush1.msra.mxu0 %v391
        %460 = vmatprep.subr.mxu0 %v390
        %461 = vmatpush1.msra.mxu0 %v389
        %462 = vmatprep.subr.mxu0 %v388
        %463 = vmatpush1.msra.mxu0 %v387
        %464 = vmatprep.subr.mxu0 %v386
        %465 = vmatpush1.msra.mxu0 %v385
        %466 = vmatprep.subr.mxu0 0.0
        %467 = vmatpush2.msra.mxu0 0.0
        %468 = vmatprep.subr.mxu0 0.0
        %469 = vmatpush2.msra.mxu0 0.0
        %470 = vmatprep.subr.mxu0 0.0
        %471 = vmatpush2.msra.mxu0 0.0
        %472 = vmatprep.subr.mxu0 0.0
        %473 = vmatpush2.msra.mxu0 0.0
        %474 = vmatprep.subr.mxu0 0.0
        %475 = vmatpush2.msra.mxu0 0.0
        %476 = vmatprep.subr.mxu0 0.0
        %477 = vmatpush2.msra.mxu0 0.0
        %478 = vmatprep.subr.mxu0 0.0
        %479 = vmatpush2.msra.mxu0 0.0
        %480 = vmatprep.subr.mxu0 0.0
        %481 = vmatpush2.msra.mxu0 0.0
        %482 = vmatprep.subr.mxu0 0.0
        %483 = vmatpush2.msra.mxu0 0.0
        %484 = vmatprep.subr.mxu0 0.0
        %485 = vmatpush2.msra.mxu0 0.0
        %486 = vmatprep.subr.mxu0 0.0
        %487 = vmatpush2.msra.mxu0 0.0
        %488 = vmatprep.subr.mxu0 0.0
        %489 = vmatpush2.msra.mxu0 0.0
        %490 = vmatprep.subr.mxu0 0.0
        %491 = vmatpush2.msra.mxu0 0.0
        %492 = vmatprep.subr.mxu0 0.0
        %493 = vmatpush2.msra.mxu0 0.0
        %494 = vmatprep.subr.mxu0 0.0
        %495 = vmatpush2.msra.mxu0 0.0
        %496 = vmatprep.subr.mxu0 0.0
        %497 = vmatpush2.msra.mxu0 0.0
        %498 = vmatprep.mubr.f32.mxu0 0.0
        %499 = vmatmul.mubr.f32.gmra.mxu0 %v423
        %v500 = vpop.f32.mrf.mxu0
        %v501 = vadd.f32 %v404, %v500
        %v502 = vpop.f32.mrf.mxu0
        %v503 = vadd.f32 %v404, %v502
        %504 = vmatprep.mubr.f32.mxu0 0.0
        %505 = vmatmul.mubr.f32.gmra.mxu0 %v426
        %v506 = vpop.f32.mrf.mxu0
        %v507 = vadd.f32 %v409, %v506
        %v508 = vpop.f32.mrf.mxu0
        %v509 = vadd.f32 %v409, %v508
        %510 = vmatprep.mubr.f32.mxu0 0.0
        %511 = vmatmul.mubr.f32.gmra.mxu0 %v429
        %v512 = vpop.f32.mrf.mxu0
        %v513 = vadd.f32 %v414, %v512
        %v514 = vpop.f32.mrf.mxu0
        %v515 = vadd.f32 %v414, %v514
        %516 = vmatprep.mubr.f32.mxu0 0.0
        %517 = vmatmul.mubr.f32.gmra.mxu0 %v432
        %v518 = vpop.f32.mrf.mxu0
        %v519 = vadd.f32 %v419, %v518
        %v520 = vpop.f32.mrf.mxu0
        %v521 = vadd.f32 %v419, %v520
        %522 = vdwg.mxu0
        %v523 = vmax.f32 %v501, 0.0
        %v524 = vmax.f32 %v503, 0.0
        %v525 = vmax.f32 %v507, 0.0
        %v526 = vmax.f32 %v509, 0.0
        %v527 = vmax.f32 %v513, 0.0
        %v528 = vmax.f32 %v515, 0.0
        %v529 = vmax.f32 %v519, 0.0
        %v530 = vmax.f32 %v521, 0.0
        %v531 = vld [vmem:[%s5] sm:$0x1]
        %v533 = vsel %vm421, %v531, 0
        %535 = vmatprep.subr.mxu0 0.0
        %536 = vmatpush1.msra.mxu0 0.0
        %537 = vmatprep.subr.mxu0 0.0
        %538 = vmatpush1.msra.mxu0 0.0
        %539 = vmatprep.subr.mxu0 0.0
        %540 = vmatpush1.msra.mxu0 0.0
        %541 = vmatprep.subr.mxu0 0.0
        %542 = vmatpush1.msra.mxu0 0.0
        %543 = vmatprep.subr.mxu0 0.0
        %544 = vmatpush1.msra.mxu0 0.0
        %545 = vmatprep.subr.mxu0 0.0
        %546 = vmatpush1.msra.mxu0 0.0
        %547 = vmatprep.subr.mxu0 0.0
        %548 = vmatpush1.msra.mxu0 0.0
        %549 = vmatprep.subr.mxu0 0.0
        %550 = vmatpush1.msra.mxu0 0.0
        %551 = vmatprep.subr.mxu0 0.0
        %552 = vmatpush1.msra.mxu0 0.0
        %553 = vmatprep.subr.mxu0 0.0
        %554 = vmatpush1.msra.mxu0 0.0
        %555 = vmatprep.subr.mxu0 0.0
        %556 = vmatpush1.msra.mxu0 0.0
        %557 = vmatprep.subr.mxu0 0.0
        %558 = vmatpush1.msra.mxu0 0.0
        %559 = vmatprep.subr.mxu0 %v530
        %560 = vmatpush1.msra.mxu0 %v529
        %561 = vmatprep.subr.mxu0 %v528
        %562 = vmatpush1.msra.mxu0 %v527
        %563 = vmatprep.subr.mxu0 %v526
        %564 = vmatpush1.msra.mxu0 %v525
        %565 = vmatprep.subr.mxu0 %v524
        %566 = vmatpush1.msra.mxu0 %v523
        %567 = vmatprep.subr.mxu0 0.0
        %568 = vmatpush2.msra.mxu0 0.0
        %569 = vmatprep.subr.mxu0 0.0
        %570 = vmatpush2.msra.mxu0 0.0
        %571 = vmatprep.subr.mxu0 0.0
        %572 = vmatpush2.msra.mxu0 0.0
        %573 = vmatprep.subr.mxu0 0.0
        %574 = vmatpush2.msra.mxu0 0.0
        %575 = vmatprep.subr.mxu0 0.0
        %576 = vmatpush2.msra.mxu0 0.0
        %577 = vmatprep.subr.mxu0 0.0
        %578 = vmatpush2.msra.mxu0 0.0
        %579 = vmatprep.subr.mxu0 0.0
        %580 = vmatpush2.msra.mxu0 0.0
        %581 = vmatprep.subr.mxu0 0.0
        %582 = vmatpush2.msra.mxu0 0.0
        %583 = vmatprep.subr.mxu0 0.0
        %584 = vmatpush2.msra.mxu0 0.0
        %585 = vmatprep.subr.mxu0 0.0
        %586 = vmatpush2.msra.mxu0 0.0
        %587 = vmatprep.subr.mxu0 0.0
        %588 = vmatpush2.msra.mxu0 0.0
        %589 = vmatprep.subr.mxu0 0.0
        %590 = vmatpush2.msra.mxu0 0.0
        %591 = vmatprep.subr.mxu0 0.0
        %592 = vmatpush2.msra.mxu0 0.0
        %593 = vmatprep.subr.mxu0 0.0
        %594 = vmatpush2.msra.mxu0 0.0
        %595 = vmatprep.subr.mxu0 0.0
        %596 = vmatpush2.msra.mxu0 0.0
        %597 = vmatprep.subr.mxu0 0.0
        %598 = vmatpush2.msra.mxu0 0.0
        %599 = vmatprep.mubr.f32.mxu0 0.0
        %600 = vmatmul.mubr.f32.gmra.mxu0 %v533
        %v601 = vpop.f32.mrf.mxu0
        %v602 = vadd.f32 0.0, %v601
        %v603 = vpop.f32.mrf.mxu0
        %v604 = vadd.f32 0.0, %v603
        %605 = vdwg.mxu0
        %v606 = vtanh.pop %v602
        %v607 = vtanh.pop %v604
        %v610 = vcombine.low %v606, %v607
        %v612 = vunpack.c.l.s4 1966171168
        %v613 = vunpack.c.0.s8 %v612
        %v614 = vlaneseq
        %v615 = vshrl.u32 %v614, 7
        %v616 = vsub.s32 %v613, %v615
        %v617 = vrot.slane %v610, %v616
        %v619 = vunpack.c.l.s4 1966171168
        %v620 = vunpack.c.0.s8 %v619
        %v621 = vlaneseq
        %v622 = vshrl.u32 %v621, 7
        %v623 = vsub.s32 %v620, %v622
        %v624 = vrot.slane %v617, %v623
        %v626 = vlaneseq
        %vm627 = vcmp.ge.s32.totalorder %v626, 0
        %vm628 = vcmp.lt.s32.totalorder %v626, 256
        %vm629 = vmand %vm627, %vm628
        %630 = vst.msk [vmem:[%s245] sm:$0x3] %vm629, %v624
        %s631 = sand.u32 %s159, 1
        %s632 = scalar_lea.sflag [#allocation3], %s631
        %s633 = sand.u32 %s159, 1
        %s634 = smul.addr %s633, 2
        %s635 = scalar_lea.vmem [#allocation2], %s634
        // Predicated region
        $region45: #{tpu_custom_call.1} parent=43 // pred_check
          %p636 = pneg %p169
        $region46: #{tpu_custom_call.1} parent=43 // pred_check_branch
          %638 = sbr.rel (%p636) target = $region48
        $region47: #{tpu_custom_call.1} parent=43 // pred_region
          %s639 = smul.u32 2, %s20
          %s641 = ssub.s32 32, 32
          %642 = vsyncadd %s632, %s641
          %s643 = smul.addr %s639, 16
          %s644 = scalar_lea.hbm %s6, %s643
          %s646 = sshll.u32 %s635, 4
          %s647 = int_to_ptr.vmem [resolvable:$true] %s646
          %649 = dma.vmem_to_hbm [thread:$0]  %s647, 32, %s644, %s632
        $region48: #{tpu_custom_call.1} parent=43 // pred_fallthru
          _
      $region44: #{tpu_custom_call.1} parent=5 // pred_fallthru
        _
      %p650 = scmp.le.s32.totalorder 2, %s15
      // Predicated region
      $region49: #{tpu_custom_call.1} parent=5 // pred_check
        %p651 = pneg %p650
      $region50: #{tpu_custom_call.1} parent=5 // pred_check_branch
        %653 = sbr.rel (%p651) target = $region52
      $region51: #{tpu_custom_call.1} parent=5 // pred_region
        %s654 = ssub.s32 %s15, 2
        // Predicated region
        $region53: #{tpu_custom_call.1} parent=51 // pred_check
          %p655 = pneg %p175
        $region54: #{tpu_custom_call.1} parent=51 // pred_check_branch
          %657 = sbr.rel (%p655) target = $region56
        $region55: #{tpu_custom_call.1} parent=51 // pred_region
          %s658 = sand.u32 %s160, 1
          %s659 = scalar_lea.sflag [#allocation3], %s658
          %s660 = sand.u32 %s160, 1
          %s661 = smul.addr %s660, 2
          %s662 = scalar_lea.vmem [#allocation2], %s661
          %663 = dma.done %s659, 32
        $region56: #{tpu_custom_call.1} parent=51 // pred_fallthru
          _
      $region52: #{tpu_custom_call.1} parent=5 // pred_fallthru
        _
    $region6: #{tpu_custom_call.1} parent=1 // loop_footer
      %s19 = sadd.s32 1, %s15
    $region7: #{tpu_custom_call.1} parent=1 // loop_footer_branch
      %14 = sbr.rel target = $region3
    $region8: #{tpu_custom_call.1} parent=1 // loop_exit
      _
    %664 = vsyncpa [#allocation3], 1
    %s665 = scalar_lea.sflag [#allocation3], 1
    %666 = vsyncpa %s665, 1

</llo_original>
